<compile_context>
chip_gen: v7x
topology: tpu7x:2x2x1
jax: 0.10.0
libtpu: 0.0.40
codegen_flags: <defaults>
</compile_context>

<pallas_src>
import functools

import jax
import jax.numpy as jnp
from jax.experimental import pallas as pl
from jax.experimental.pallas import tpu as pltpu


def _channel_attention_kernel(x_ref, w1_ref, w2_ref, o_ref, sum_sc, max_sc,
                              *, hw_total: int, tile_hw: int):
    # x_ref:  (1, C, TILE_HW)  spatial tile of one batch element
    # w1_ref: (HID, C)         first 1x1 conv weight (out, in)
    # w2_ref: (C, HID)         second 1x1 conv weight (out, in)
    # o_ref:  (1, C, 1)
    # sum_sc/max_sc: (C, 1) f32 running accumulators (persist across the grid)
    t = pl.program_id(1)

    x = x_ref[0].astype(jnp.float32)                        # (C, TILE_HW)

    if hw_total % tile_hw != 0:
        # Remainder tile: mask out-of-range lanes (0 for sum, -inf for max).
        lane = jax.lax.broadcasted_iota(jnp.int32, x.shape, 1)
        valid = (lane + t * tile_hw) < hw_total
        x_sum = jnp.where(valid, x, 0.0)
        x_max = jnp.where(valid, x, -jnp.inf)
    else:
        x_sum = x
        x_max = x

    part_sum = jnp.sum(x_sum, axis=-1, keepdims=True)       # (C, 1)
    part_max = jnp.max(x_max, axis=-1, keepdims=True)       # (C, 1)

    @pl.when(t == 0)
    def _():
        sum_sc[...] = jnp.zeros_like(sum_sc)
        max_sc[...] = jnp.full_like(max_sc, -jnp.inf)

    sum_sc[...] = sum_sc[...] + part_sum
    max_sc[...] = jnp.maximum(max_sc[...], part_max)

    @pl.when(t == pl.num_programs(1) - 1)
    def _():
        avg = sum_sc[...] * (1.0 / hw_total)                 # (C, 1), true H*W
        mx = max_sc[...]                                     # (C, 1)
        # Batch both pooled vectors through the shared MLP as one (C, 2) RHS.
        col = jax.lax.broadcasted_iota(jnp.int32, (avg.shape[0], 2), 1)
        pooled = jnp.where(col == 0, avg, mx)                # (C, 2)
        h = jnp.dot(w1_ref[...], pooled,
                    preferred_element_type=jnp.float32)      # (HID, 2)
        h = jnp.maximum(h, 0.0)                              # ReLU
        y = jnp.dot(w2_ref[...], h,
                    preferred_element_type=jnp.float32)      # (C, 2)
        o_ref[0] = jax.nn.sigmoid(y[:, 0:1] + y[:, 1:2])     # (C, 1)


def _pick_tile_hw(C, HW, itemsize, target_block_bytes=4 * 1024 * 1024):
    """Largest lane-aligned spatial tile whose input block stays under budget."""
    if C * HW * itemsize <= target_block_bytes:
        return HW                                    # single full-width block
    t = target_block_bytes // (C * itemsize)
    t = max(128, (t // 128) * 128)                   # multiple of 128 lanes
    return min(t, HW)


def channel_attention(x, w1, w2, *, tile_hw=None,
                      vmem_limit_bytes=32 * 1024 * 1024):
    """x: (B, C, H, W); w1: (C//r, C); w2: (C, C//r). Returns (B, C, 1, 1) f32."""
    B, C, H, W = x.shape
    HW = H * W
    hid = w1.shape[0]
    itemsize = jnp.dtype(x.dtype).itemsize

    if tile_hw is None:
        tile_hw = _pick_tile_hw(C, HW, itemsize)
    n_t = pl.cdiv(HW, tile_hw)

    x_flat = x.reshape(B, C, HW)

    kernel = functools.partial(
        _channel_attention_kernel, hw_total=HW, tile_hw=tile_hw)

    out = pl.pallas_call(
        kernel,
        out_shape=jax.ShapeDtypeStruct((B, C, 1), jnp.float32),
        grid_spec=pltpu.PrefetchScalarGridSpec(
            num_scalar_prefetch=0,
            grid=(B, n_t),                              # reduction axis last
            in_specs=[
                pl.BlockSpec((1, C, tile_hw), lambda b, t: (b, 0, t)),
                pl.BlockSpec((hid, C), lambda b, t: (0, 0)),   # constant -> fetched once
                pl.BlockSpec((C, hid), lambda b, t: (0, 0)),
            ],
            out_specs=pl.BlockSpec((1, C, 1), lambda b, t: (b, 0, 0)),
            scratch_shapes=[
                pltpu.VMEM((C, 1), jnp.float32),        # running sum
                pltpu.VMEM((C, 1), jnp.float32),        # running max
            ],
        ),
        compiler_params=pltpu.CompilerParams(
            dimension_semantics=("parallel", "arbitrary"),
            vmem_limit_bytes=vmem_limit_bytes,
        ),
    )(x_flat, w1, w2)

    return out.reshape(B, C, 1, 1)


def channel_attention_ref(x, w1, w2):
    """Pure-JAX reference matching the PyTorch forward."""
    avg = jnp.mean(x, axis=(2, 3))                 # (B, C)
    mx = jnp.max(x, axis=(2, 3))                   # (B, C)

    def mlp(v):                                    # v: (B, C)
        h = jnp.maximum(v @ w1.T, 0.0)             # (B, HID)
        return h @ w2.T                            # (B, C)

    out = jax.nn.sigmoid(mlp(avg) + mlp(mx))       # (B, C)
    return out[:, :, None, None]


if __name__ == "__main__":
    base_key = jax.random.PRNGKey(0)

    def run_case(B, C, H, W, ratio, tile_hw=None, tag=0):
        hid = max(1, C // ratio)
        kx, k1, k2 = jax.random.split(jax.random.fold_in(base_key, tag), 3)
        x = jax.random.normal(kx, (B, C, H, W), dtype=jnp.float32)
        # Conv2d(out, in, 1, 1) weights squeezed to 2-D.
        w1 = jax.random.normal(k1, (hid, C), dtype=jnp.float32) * 0.1
        w2 = jax.random.normal(k2, (C, hid), dtype=jnp.float32) * 0.1

        out = jax.block_until_ready(channel_attention(x, w1, w2, tile_hw=tile_hw))
        ref = channel_attention_ref(x, w1, w2)
        assert out.shape == (B, C, 1, 1)
        assert jnp.allclose(out, ref, atol=1e-5, rtol=1e-5), (B, C, H, W, tile_hw)

    # Module defaults: channel=64, rotio=16 -> hidden=4; small spatial sizes.
    run_case(B=2, C=64, H=16, W=16, ratio=16, tag=1)                # single tile
    run_case(B=2, C=64, H=16, W=16, ratio=16, tile_hw=128, tag=2)   # multi-tile reduction
    run_case(B=2, C=64, H=18, W=18, ratio=16, tile_hw=128, tag=3)   # remainder tile + masking

    print("KERNEL_OK")
</pallas_src>

<mosaic_0001>
module attributes {stable_mosaic.version = 11 : i64} {
  func.func @_channel_attention_kernel(%arg0: i32, %arg1: i32, %arg2: memref<1x64x256xf32, #tpu.memory_space<vmem>>, %arg3: memref<4x64xf32, #tpu.memory_space<vmem>>, %arg4: memref<64x4xf32, #tpu.memory_space<vmem>>, %arg5: memref<1x64x1xf32, #tpu.memory_space<vmem>>, %arg6: memref<64x1xf32, #tpu.memory_space<vmem>>, %arg7: memref<64x1xf32, #tpu.memory_space<vmem>>) attributes {dimension_semantics = [#tpu.dimension_semantics<parallel>, #tpu.dimension_semantics<arbitrary>], iteration_bounds = array<i64: 2, 1>, scalar_prefetch = 0 : i64, scratch_operands = 2 : i64, tpu.core_type = #tpu.core_type<tc>, window_params = [{transform_indices = @transform_0, window_bounds = array<i64: 1, 64, 256>}, {pipeline_mode = #tpu.pipeline_mode<synchronous>, transform_indices = @transform_1, window_bounds = array<i64: 4, 64>}, {pipeline_mode = #tpu.pipeline_mode<synchronous>, transform_indices = @transform_2, window_bounds = array<i64: 64, 4>}, {transform_indices = @transform_3, window_bounds = array<i64: 1, 64, 1>}]} {
    %c0 = arith.constant 0 : index
    %c0_0 = arith.constant 0 : index
    %c0_1 = arith.constant 0 : index
    %0 = vector.load %arg2[%c0, %c0_0, %c0_1] : memref<1x64x256xf32, #tpu.memory_space<vmem>>, vector<1x64x256xf32>
    %1 = vector.shape_cast %0 : vector<1x64x256xf32> to vector<64x256xf32>
    %cst = arith.constant dense<0.000000e+00> : vector<64xf32>
    %2 = vector.multi_reduction <add>, %1, %cst [1] : vector<64x256xf32> to vector<64xf32>
    %3 = vector.shape_cast %2 : vector<64xf32> to vector<64x1xf32>
    %cst_2 = arith.constant dense<0xFF800000> : vector<64xf32>
    %4 = vector.multi_reduction <maximumf>, %1, %cst_2 [1] : vector<64x256xf32> to vector<64xf32>
    %5 = vector.shape_cast %4 : vector<64xf32> to vector<64x1xf32>
    %c0_i32 = arith.constant 0 : i32
    %6 = arith.cmpi eq, %arg1, %c0_i32 : i32
    %7 = arith.extui %6 : i1 to i32
    %c0_i32_3 = arith.constant 0 : i32
    %8 = arith.cmpi ne, %7, %c0_i32_3 : i32
    scf.if %8 {
      %cst_14 = arith.constant 0.000000e+00 : f32
      %18 = vector.broadcast %cst_14 : f32 to vector<64x1xf32>
      %c0_15 = arith.constant 0 : index
      %c0_16 = arith.constant 0 : index
      %19 = vector.load %arg6[%c0_15, %c0_16] : memref<64x1xf32, #tpu.memory_space<vmem>>, vector<64x1xf32>
      tpu.vector_store %arg6[%c0_15, %c0_16], %18 {strides = array<i32>} : memref<64x1xf32, #tpu.memory_space<vmem>>, vector<64x1xf32>,
      %cst_17 = arith.constant 0xFF800000 : f32
      %20 = vector.broadcast %cst_17 : f32 to vector<64x1xf32>
      %c0_18 = arith.constant 0 : index
      %c0_19 = arith.constant 0 : index
      %21 = vector.load %arg7[%c0_18, %c0_19] : memref<64x1xf32, #tpu.memory_space<vmem>>, vector<64x1xf32>
      tpu.vector_store %arg7[%c0_18, %c0_19], %20 {strides = array<i32>} : memref<64x1xf32, #tpu.memory_space<vmem>>, vector<64x1xf32>,
    } else {
    }
    %c0_4 = arith.constant 0 : index
    %c0_5 = arith.constant 0 : index
    %9 = vector.load %arg6[%c0_4, %c0_5] : memref<64x1xf32, #tpu.memory_space<vmem>>, vector<64x1xf32>
    %10 = arith.addf %9, %3 : vector<64x1xf32>
    %c0_6 = arith.constant 0 : index
    %c0_7 = arith.constant 0 : index
    %11 = vector.load %arg6[%c0_6, %c0_7] : memref<64x1xf32, #tpu.memory_space<vmem>>, vector<64x1xf32>
    tpu.vector_store %arg6[%c0_6, %c0_7], %10 {strides = array<i32>} : memref<64x1xf32, #tpu.memory_space<vmem>>, vector<64x1xf32>,
    %c0_8 = arith.constant 0 : index
    %c0_9 = arith.constant 0 : index
    %12 = vector.load %arg7[%c0_8, %c0_9] : memref<64x1xf32, #tpu.memory_space<vmem>>, vector<64x1xf32>
    %13 = arith.maximumf %12, %5 : vector<64x1xf32>
    %c0_10 = arith.constant 0 : index
    %c0_11 = arith.constant 0 : index
    %14 = vector.load %arg7[%c0_10, %c0_11] : memref<64x1xf32, #tpu.memory_space<vmem>>, vector<64x1xf32>
    tpu.vector_store %arg7[%c0_10, %c0_11], %13 {strides = array<i32>} : memref<64x1xf32, #tpu.memory_space<vmem>>, vector<64x1xf32>,
    %c0_i32_12 = arith.constant 0 : i32
    %15 = arith.cmpi eq, %arg1, %c0_i32_12 : i32
    %16 = arith.extui %15 : i1 to i32
    %c0_i32_13 = arith.constant 0 : i32
    %17 = arith.cmpi ne, %16, %c0_i32_13 : i32
    scf.if %17 {
      %c0_14 = arith.constant 0 : index
      %c0_15 = arith.constant 0 : index
      %18 = vector.load %arg6[%c0_14, %c0_15] : memref<64x1xf32, #tpu.memory_space<vmem>>, vector<64x1xf32>
      %cst_16 = arith.constant 3.906250e-03 : f32
      %19 = vector.broadcast %cst_16 : f32 to vector<64x1xf32>
      %20 = arith.mulf %18, %19 : vector<64x1xf32>
      %c0_17 = arith.constant 0 : index
      %c0_18 = arith.constant 0 : index
      %21 = vector.load %arg7[%c0_17, %c0_18] : memref<64x1xf32, #tpu.memory_space<vmem>>, vector<64x1xf32>
      %22 = tpu.iota {dimensions = array<i32: 1>} : vector<64x2xi32>
      %c0_i32_19 = arith.constant 0 : i32
      %23 = vector.broadcast %c0_i32_19 : i32 to vector<64x2xi32>
      %24 = arith.cmpi eq, %22, %23 : vector<64x2xi32>
      %25 = vector.shape_cast %20 : vector<64x1xf32> to vector<64x1xf32>
      %26 = vector.broadcast %25 : vector<64x1xf32> to vector<64x2xf32>
      %27 = vector.shape_cast %21 : vector<64x1xf32> to vector<64x1xf32>
      %28 = vector.broadcast %27 : vector<64x1xf32> to vector<64x2xf32>
      %29 = arith.select %24, %26, %28 : vector<64x2xi1>, vector<64x2xf32>
      %c0_20 = arith.constant 0 : index
      %c0_21 = arith.constant 0 : index
      %30 = vector.load %arg3[%c0_20, %c0_21] : memref<4x64xf32, #tpu.memory_space<vmem>>, vector<4x64xf32>
      %cst_22 = arith.constant dense<0.000000e+00> : vector<4x2xf32>
      %31 = tpu.matmul %30, %29, %cst_22 {dimension_numbers = #tpu.dot_dimension_numbers<[1], [0], [0], [1], [0, 0, 1, 1], [], []>} : vector<4x64xf32>, vector<64x2xf32>, vector<4x2xf32> -> vector<4x2xf32>
      %cst_23 = arith.constant 0.000000e+00 : f32
      %32 = vector.broadcast %cst_23 : f32 to vector<4x2xf32>
      %33 = arith.maximumf %31, %32 : vector<4x2xf32>
      %c0_24 = arith.constant 0 : index
      %c0_25 = arith.constant 0 : index
      %34 = vector.load %arg4[%c0_24, %c0_25] : memref<64x4xf32, #tpu.memory_space<vmem>>, vector<64x4xf32>
      %cst_26 = arith.constant dense<0.000000e+00> : vector<64x2xf32>
      %35 = tpu.matmul %34, %33, %cst_26 {dimension_numbers = #tpu.dot_dimension_numbers<[1], [0], [0], [1], [0, 0, 1, 1], [], []>} : vector<64x4xf32>, vector<4x2xf32>, vector<64x2xf32> -> vector<64x2xf32>
      %36 = vector.extract_strided_slice %35 {offsets = [0, 0], sizes = [64, 1], strides = [1, 1]} : vector<64x2xf32> to vector<64x1xf32>
      %37 = vector.extract_strided_slice %35 {offsets = [0, 1], sizes = [64, 1], strides = [1, 1]} : vector<64x2xf32> to vector<64x1xf32>
      %38 = arith.addf %36, %37 : vector<64x1xf32>
      %39 = arith.negf %38 : vector<64x1xf32>
      %40 = math.exp %39 : vector<64x1xf32>
      %cst_27 = arith.constant 1.000000e+00 : f32
      %41 = vector.broadcast %cst_27 : f32 to vector<64x1xf32>
      %42 = arith.addf %41, %40 : vector<64x1xf32>
      %43 = arith.divf %41, %42 : vector<64x1xf32>
      %c0_28 = arith.constant 0 : index
      %c0_29 = arith.constant 0 : index
      %c0_30 = arith.constant 0 : index
      %44 = vector.load %arg5[%c0_28, %c0_29, %c0_30] : memref<1x64x1xf32, #tpu.memory_space<vmem>>, vector<1x64x1xf32>
      %45 = vector.shape_cast %44 : vector<1x64x1xf32> to vector<64x1xf32>
      %46 = vector.shape_cast %43 : vector<64x1xf32> to vector<1x64x1xf32>
      tpu.vector_store %arg5[%c0_28, %c0_29, %c0_30], %46 {strides = array<i32>} : memref<1x64x1xf32, #tpu.memory_space<vmem>>, vector<1x64x1xf32>,
    } else {
    }
    return
  }
  func.func @transform_0(%arg0: i32, %arg1: i32) -> (i32, i32, i32) {
    %c0_i32 = arith.constant 0 : i32
    %c0_i32_0 = arith.constant 0 : i32
    return %arg0, %c0_i32, %arg1 : i32, i32, i32
  }
  func.func @transform_1(%arg0: i32, %arg1: i32) -> (i32, i32) {
    %c0_i32 = arith.constant 0 : i32
    %c0_i32_0 = arith.constant 0 : i32
    %c0_i32_1 = arith.constant 0 : i32
    return %c0_i32, %c0_i32_0 : i32, i32
  }
  func.func @transform_2(%arg0: i32, %arg1: i32) -> (i32, i32) {
    %c0_i32 = arith.constant 0 : i32
    %c0_i32_0 = arith.constant 0 : i32
    %c0_i32_1 = arith.constant 0 : i32
    return %c0_i32, %c0_i32_0 : i32, i32
  }
  func.func @transform_3(%arg0: i32, %arg1: i32) -> (i32, i32, i32) {
    %c0_i32 = arith.constant 0 : i32
    %c0_i32_0 = arith.constant 0 : i32
    %c0_i32_1 = arith.constant 0 : i32
    return %arg0, %c0_i32, %c0_i32_0 : i32, i32, i32
  }
}

</mosaic_0001>

<llo_original>
// kernel: tpu_custom_call.1
$region0: #{tpu_custom_call.1}
  #allocation0 [shape = 'u32[]', space=smem, size = 0x4, offset = 0x4, fixed_abs, tag = 'smem constant byte address 0x4 - core index']
  #allocation1 [shape = 'u32[144,128]{1,0:T(1,128)}', space=vmem, size = 0x12000, scoped, tag = 'internal scratch']
  #allocation2 [shape = 'f32[64,1]{1,0:T(8,128)}', space=vmem, size = 0x8000, scoped, tag = 'scratch operand']
  #allocation3 [shape = 'f32[64,1]{1,0:T(8,128)}', space=vmem, size = 0x8000, scoped, tag = 'scratch operand']
  %s0 = inlined_call_operand.hbm [shape: f32[2,64,256], index: 0, kind: input, shape index: {}]
  %s1 = inlined_call_operand.vmem [shape: f32[4,64], index: 1, kind: input, shape index: {}]
  %s2 = inlined_call_operand.vmem [shape: f32[64,4], index: 2, kind: input, shape index: {}]
  %s3 = inlined_call_operand.vmem [shape: f32[2,64,1], index: 3, kind: output, shape index: {}]
  %s4 = sld [smem:[#allocation0]]
  $region57: #{tpu_custom_call.1} parent=0
    _
  %s6 = ssub.s32 1, %s4
  %s7 = scalar_select 0, %s6, %s4
  $region1: #{tpu_custom_call.1} parent=0
    #allocation4 [shape = 'u8[131072]{0}', space=vmem, size = 0x20000, scoped, tag = 'input window, operand 0']
    #allocation5 [shape = 's32[2]{0}', space=sflag, size = 0x8, scoped, tag = 'scoped memory for tpu_custom_call.1']
    %8 = vsyncpa [#allocation5], 0
    %s9 = scalar_lea.sflag [#allocation5], 1
    %10 = vsyncpa %s9, 0
    loop: start=0, step=1, limit=4
    $region2: #{tpu_custom_call.1} parent=1 // loop_pre_header
      _
    $region3: #{tpu_custom_call.1} parent=1 // loop_header
      %s12 = sphi 0, %s16
      %p13 = scmp.ge.s32.totalorder %s12, 4
      %s19 = sphi 0, %s31
      %s20 = sphi 0, %s27
      %s21 = sphi 0, %s19
      %s22 = sphi 0, %s20
      %s23 = sphi 0, %s21
      %s24 = sphi 0, %s22
      %s36 = sphi 0, %s38
      %s39 = sphi 0, %s36
      %s40 = sphi 0, %s39
      %s56 = sphi 0, %s40
      %s60 = sphi 0, %s60
      %s62 = sphi 0, %s60
      %s63 = sphi 0, %s62
      %s77 = sphi 0, %s63
      %s81 = sphi 0, %s81
      %s83 = sphi 0, %s81
      %s84 = sphi 0, %s83
      %s98 = sphi 0, %s84
      %s104 = sphi 0, %s106
      %s107 = sphi 0, %s104
      %s108 = sphi 0, %s107
      %s124 = sphi 0, %s108
    $region4: #{tpu_custom_call.1} parent=1 // loop_header_branch
      %15 = sbr.rel (%p13) target = $region8
    $region5: #{tpu_custom_call.1} parent=1 // loop_body
      %s17 = ssub.s32 %s12, 1
      %s18 = ssub.s32 %s12, 2
      %s25 = sadd.s32 1, %s20
      %p26 = scmp.ge.s32.totalorder %s25, 1
      %s27 = scalar_select %p26, 0, %s25
      %s28 = sadd.s32 1, %s19
      %s29 = scalar_select %p26, %s28, %s19
      %p30 = scmp.ge.s32.totalorder %s29, 2
      %s31 = scalar_select %p30, 0, %s29
      %s32 = ssub.s32 %s19, %s31
      %s33 = ssub.s32 %s20, %s27
      %s34 = sor.u32 %s32, %s33
      %p35 = scmp.eq.s32.totalorder %s34, 0
      %s37 = sadd.s32 %s36, 1
      %s38 = scalar_select %p35, %s36, %s37
      %p41 = pneg %p35
      %p42 = scmp.eq.s32.totalorder %s12, 1
      %p43 = por %p41, %p42
      %p44 = scmp.ne.s32.totalorder %s36, %s39
      %p45 = scmp.eq.s32.totalorder %s12, 0
      %p46 = por %p44, %p45
      %p47 = scmp.ne.s32.totalorder %s36, %s39
      %p48 = scmp.eq.s32.totalorder %s17, 1
      %p49 = por %p47, %p48
      %p50 = scmp.ne.s32.totalorder %s39, %s40
      %p51 = scmp.eq.s32.totalorder %s17, 0
      %p52 = por %p50, %p51
      %p53 = scmp.ne.s32.totalorder %s39, %s40
      %p54 = scmp.eq.s32.totalorder %s18, 1
      %p55 = por %p53, %p54
      %p57 = scmp.ne.s32.totalorder %s40, %s56
      %p58 = scmp.eq.s32.totalorder %s18, 0
      %p59 = por %p57, %p58
      %s61 = sadd.s32 %s60, 1
      %p64 = scmp.eq.s32.totalorder %s12, 1
      %p65 = scmp.ne.s32.totalorder %s60, %s62
      %p66 = scmp.eq.s32.totalorder %s12, 0
      %p67 = por %p65, %p66
      %p68 = scmp.ne.s32.totalorder %s60, %s62
      %p69 = scmp.eq.s32.totalorder %s17, 1
      %p70 = por %p68, %p69
      %p71 = scmp.ne.s32.totalorder %s62, %s63
      %p72 = scmp.eq.s32.totalorder %s17, 0
      %p73 = por %p71, %p72
      %p74 = scmp.ne.s32.totalorder %s62, %s63
      %p75 = scmp.eq.s32.totalorder %s18, 1
      %p76 = por %p74, %p75
      %p78 = scmp.ne.s32.totalorder %s63, %s77
      %p79 = scmp.eq.s32.totalorder %s18, 0
      %p80 = por %p78, %p79
      %s82 = sadd.s32 %s81, 1
      %p85 = scmp.eq.s32.totalorder %s12, 1
      %p86 = scmp.ne.s32.totalorder %s81, %s83
      %p87 = scmp.eq.s32.totalorder %s12, 0
      %p88 = por %p86, %p87
      %p89 = scmp.ne.s32.totalorder %s81, %s83
      %p90 = scmp.eq.s32.totalorder %s17, 1
      %p91 = por %p89, %p90
      %p92 = scmp.ne.s32.totalorder %s83, %s84
      %p93 = scmp.eq.s32.totalorder %s17, 0
      %p94 = por %p92, %p93
      %p95 = scmp.ne.s32.totalorder %s83, %s84
      %p96 = scmp.eq.s32.totalorder %s18, 1
      %p97 = por %p95, %p96
      %p99 = scmp.ne.s32.totalorder %s84, %s98
      %p100 = scmp.eq.s32.totalorder %s18, 0
      %p101 = por %p99, %p100
      %s102 = ssub.s32 %s19, %s31
      %p103 = scmp.eq.s32.totalorder %s102, 0
      %s105 = sadd.s32 %s104, 1
      %s106 = scalar_select %p103, %s104, %s105
      %p109 = pneg %p103
      %p110 = scmp.eq.s32.totalorder %s12, 1
      %p111 = por %p109, %p110
      %p112 = scmp.ne.s32.totalorder %s104, %s107
      %p113 = scmp.eq.s32.totalorder %s12, 0
      %p114 = por %p112, %p113
      %p115 = scmp.ne.s32.totalorder %s104, %s107
      %p116 = scmp.eq.s32.totalorder %s17, 1
      %p117 = por %p115, %p116
      %p118 = scmp.ne.s32.totalorder %s107, %s108
      %p119 = scmp.eq.s32.totalorder %s17, 0
      %p120 = por %p118, %p119
      %p121 = scmp.ne.s32.totalorder %s107, %s108
      %p122 = scmp.eq.s32.totalorder %s18, 1
      %p123 = por %p121, %p122
      %p125 = scmp.ne.s32.totalorder %s108, %s124
      %p126 = scmp.eq.s32.totalorder %s18, 0
      %p127 = por %p125, %p126
      %p128 = scmp.le.s32.totalorder 1, %s12
      %p129 = scmp.lt.s32.totalorder %s12, 3
      %p130 = pnand %p128, %p129
      %p131 = pneg %p130
      // Predicated region
      $region9: #{tpu_custom_call.1} parent=5 // pred_check
        _
      $region10: #{tpu_custom_call.1} parent=5 // pred_check_branch
        %133 = sbr.rel (%p130) target = $region12
      $region11: #{tpu_custom_call.1} parent=5 // pred_region
        %s134 = ssub.s32 %s12, 1
        // Predicated region
        $region13: #{tpu_custom_call.1} parent=11 // pred_check
          %p135 = pneg %p73
        $region14: #{tpu_custom_call.1} parent=11 // pred_check_branch
          %137 = sbr.rel (%p135) target = $region16
        $region15: #{tpu_custom_call.1} parent=11 // pred_region
          _
        $region16: #{tpu_custom_call.1} parent=11 // pred_fallthru
          _
        // Predicated region
        $region17: #{tpu_custom_call.1} parent=11 // pred_check
          %p138 = pneg %p94
        $region18: #{tpu_custom_call.1} parent=11 // pred_check_branch
          %140 = sbr.rel (%p138) target = $region20
        $region19: #{tpu_custom_call.1} parent=11 // pred_region
          _
        $region20: #{tpu_custom_call.1} parent=11 // pred_fallthru
          _
      $region12: #{tpu_custom_call.1} parent=5 // pred_fallthru
        _
      %p141 = scmp.lt.s32.totalorder %s12, 2
      // Predicated region
      $region21: #{tpu_custom_call.1} parent=5 // pred_check
        %p142 = pneg %p141
      $region22: #{tpu_custom_call.1} parent=5 // pred_check_branch
        %144 = sbr.rel (%p142) target = $region24
      $region23: #{tpu_custom_call.1} parent=5 // pred_region
        // Predicated region
        $region25: #{tpu_custom_call.1} parent=23 // pred_check
          %p145 = pneg %p46
        $region26: #{tpu_custom_call.1} parent=23 // pred_check_branch
          %147 = sbr.rel (%p145) target = $region28
        $region27: #{tpu_custom_call.1} parent=23 // pred_region
          %s148 = sand.u32 %s36, 1
          %s149 = scalar_lea.sflag [#allocation5], %s148
          %s150 = sand.u32 %s36, 1
          %s151 = smul.addr %s150, 128
          %s152 = scalar_lea.vmem [#allocation4], %s151
          %s153 = smul.u32 2, %s20
          %s155 = ssub.s32 2048, 2048
          %156 = vsyncadd %s149, %s155
          %s157 = smul.addr %s19, 16
          %s158 = sadd.s32 %s153, %s157
          %s159 = smul.addr %s158, 128
          %s160 = scalar_lea.hbm %s0, %s159
          %s161 = sshll.u32 %s152, 4
          %s162 = int_to_ptr.vmem [resolvable:$true] %s161
          %167 = dma.hbm_to_vmem [thread:$0]  %s160, 2048, %s162, %s149, 256, 256, 16
        $region28: #{tpu_custom_call.1} parent=23 // pred_fallthru
          _
      $region24: #{tpu_custom_call.1} parent=5 // pred_fallthru
        _
      %p168 = scmp.le.s32.totalorder 1, %s12
      %p169 = scmp.lt.s32.totalorder %s12, 3
      %p170 = pnand %p168, %p169
      %p171 = pneg %p170
      // Predicated region
      $region29: #{tpu_custom_call.1} parent=5 // pred_check
        _
      $region30: #{tpu_custom_call.1} parent=5 // pred_check_branch
        %173 = sbr.rel (%p170) target = $region32
      $region31: #{tpu_custom_call.1} parent=5 // pred_region
        %s174 = ssub.s32 %s12, 1
        %s175 = sand.u32 %s39, 1
        %s176 = scalar_lea.sflag [#allocation5], %s175
        %s177 = sand.u32 %s39, 1
        %s178 = smul.addr %s177, 128
        %s179 = scalar_lea.vmem [#allocation4], %s178
        // Predicated region
        $region33: #{tpu_custom_call.1} parent=31 // pred_check
          %p180 = pneg %p52
        $region34: #{tpu_custom_call.1} parent=31 // pred_check_branch
          %182 = sbr.rel (%p180) target = $region36
        $region35: #{tpu_custom_call.1} parent=31 // pred_region
          %183 = dma.done %s176, 2048
        $region36: #{tpu_custom_call.1} parent=31 // pred_fallthru
          _
        %s184 = sand.u32 %s39, 1
        %s185 = scalar_lea.sflag [#allocation5], %s184
        %s186 = sand.u32 %s39, 1
        %s187 = smul.addr %s186, 128
        %s188 = scalar_lea.vmem [#allocation4], %s187
        %p189 = pneg %p52
        %p190 = pneg %p49
        %p191 = pneg %p73
        %p192 = pneg %p70
        %p193 = pneg %p94
        %p194 = pneg %p91
        %p195 = pneg %p120
        %p196 = pneg %p117
        %p197 = scmp.lt.s32.totalorder %s21, 1
        %s198 = scalar_select %p197, %s21, 1
        %s199 = smul.addr %s198, 8
        %s200 = smul.addr %s199, 8
        %s201 = scalar_lea.vmem %s3, %s200
        %s202 = smul.u32 2, %s22
        %p203 = scmp.lt.s32.totalorder %s21, 1
        %s204 = scalar_select %p203, %s21, 1
        %s205 = smul.addr %s204, 8
        %s206 = smul.addr %s205, 8
        %s207 = scalar_lea.vmem %s3, %s206
        %v208 = vld [vmem:[%s179] sm:$0xff]
        %v209 = vld [vmem:[%s179 + $0x8] sm:$0xff]
        %v210 = vld [vmem:[%s179 + $0x10] sm:$0xff]
        %v211 = vld [vmem:[%s179 + $0x18] sm:$0xff]
        %v212 = vld [vmem:[%s179 + $0x20] sm:$0xff]
        %v213 = vld [vmem:[%s179 + $0x28] sm:$0xff]
        %v214 = vld [vmem:[%s179 + $0x30] sm:$0xff]
        %v215 = vld [vmem:[%s179 + $0x38] sm:$0xff]
        %v216 = vld [vmem:[%s179 + $0x40] sm:$0xff]
        %v217 = vld [vmem:[%s179 + $0x48] sm:$0xff]
        %v218 = vld [vmem:[%s179 + $0x50] sm:$0xff]
        %v219 = vld [vmem:[%s179 + $0x58] sm:$0xff]
        %v220 = vld [vmem:[%s179 + $0x60] sm:$0xff]
        %v221 = vld [vmem:[%s179 + $0x68] sm:$0xff]
        %v222 = vld [vmem:[%s179 + $0x70] sm:$0xff]
        %v223 = vld [vmem:[%s179 + $0x78] sm:$0xff]
        %v224 = vadd.f32 %v208, %v209
        %225 = vadd.xlane.f32.xlu0 %v224
        %v226 = vpop.xlane.xlu0 %225
        %v227 = vadd.f32 %v210, %v211
        %228 = vadd.xlane.f32.xlu0 %v227
        %v229 = vpop.xlane.xlu0 %228
        %v230 = vadd.f32 %v212, %v213
        %231 = vadd.xlane.f32.xlu0 %v230
        %v232 = vpop.xlane.xlu0 %231
        %v233 = vadd.f32 %v214, %v215
        %234 = vadd.xlane.f32.xlu0 %v233
        %v235 = vpop.xlane.xlu0 %234
        %v236 = vadd.f32 %v216, %v217
        %237 = vadd.xlane.f32.xlu0 %v236
        %v238 = vpop.xlane.xlu0 %237
        %v239 = vadd.f32 %v218, %v219
        %240 = vadd.xlane.f32.xlu0 %v239
        %v241 = vpop.xlane.xlu0 %240
        %v242 = vadd.f32 %v220, %v221
        %243 = vadd.xlane.f32.xlu0 %v242
        %v244 = vpop.xlane.xlu0 %243
        %v245 = vadd.f32 %v222, %v223
        %246 = vadd.xlane.f32.xlu0 %v245
        %v247 = vpop.xlane.xlu0 %246
        %v248 = vmax.f32 %v208, %v209
        %249 = vmax.xlane.f32.xlu0 %v248
        %v250 = vpop.xlane.xlu0 %249
        %v251 = vmax.f32 %v210, %v211
        %252 = vmax.xlane.f32.xlu0 %v251
        %v253 = vpop.xlane.xlu0 %252
        %v254 = vmax.f32 %v212, %v213
        %255 = vmax.xlane.f32.xlu0 %v254
        %v256 = vpop.xlane.xlu0 %255
        %v257 = vmax.f32 %v214, %v215
        %258 = vmax.xlane.f32.xlu0 %v257
        %v259 = vpop.xlane.xlu0 %258
        %v260 = vmax.f32 %v216, %v217
        %261 = vmax.xlane.f32.xlu0 %v260
        %v262 = vpop.xlane.xlu0 %261
        %v263 = vmax.f32 %v218, %v219
        %264 = vmax.xlane.f32.xlu0 %v263
        %v265 = vpop.xlane.xlu0 %264
        %v266 = vmax.f32 %v220, %v221
        %267 = vmax.xlane.f32.xlu0 %v266
        %v268 = vpop.xlane.xlu0 %267
        %v269 = vmax.f32 %v222, %v223
        %270 = vmax.xlane.f32.xlu0 %v269
        %v271 = vpop.xlane.xlu0 %270
        %p272 = scmp.eq.s32.totalorder %s22, 0
        // Predicated region
        $region37: #{tpu_custom_call.1} parent=31 // pred_check
          %p273 = pneg %p272
        $region38: #{tpu_custom_call.1} parent=31 // pred_check_branch
          %275 = sbr.rel (%p273) target = $region40
        $region39: #{tpu_custom_call.1} parent=31 // pred_region
          %vm276 = vcmask 7168
          %277 = vst.msk [vmem:[#allocation2] sm:$0xff] %vm276, 0.0
          %278 = vst.msk [vmem:[#allocation2 + $0x8] sm:$0xff] %vm276, 0.0
          %279 = vst.msk [vmem:[#allocation2 + $0x10] sm:$0xff] %vm276, 0.0
          %280 = vst.msk [vmem:[#allocation2 + $0x18] sm:$0xff] %vm276, 0.0
          %281 = vst.msk [vmem:[#allocation2 + $0x20] sm:$0xff] %vm276, 0.0
          %282 = vst.msk [vmem:[#allocation2 + $0x28] sm:$0xff] %vm276, 0.0
          %283 = vst.msk [vmem:[#allocation2 + $0x30] sm:$0xff] %vm276, 0.0
          %284 = vst.msk [vmem:[#allocation2 + $0x38] sm:$0xff] %vm276, 0.0
          %285 = vst.msk [vmem:[#allocation3] sm:$0xff] %vm276, -inf
          %286 = vst.msk [vmem:[#allocation3 + $0x8] sm:$0xff] %vm276, -inf
          %287 = vst.msk [vmem:[#allocation3 + $0x10] sm:$0xff] %vm276, -inf
          %288 = vst.msk [vmem:[#allocation3 + $0x18] sm:$0xff] %vm276, -inf
          %289 = vst.msk [vmem:[#allocation3 + $0x20] sm:$0xff] %vm276, -inf
          %290 = vst.msk [vmem:[#allocation3 + $0x28] sm:$0xff] %vm276, -inf
          %291 = vst.msk [vmem:[#allocation3 + $0x30] sm:$0xff] %vm276, -inf
          %292 = vst.msk [vmem:[#allocation3 + $0x38] sm:$0xff] %vm276, -inf
        $region40: #{tpu_custom_call.1} parent=31 // pred_fallthru
          _
        %v293 = vld [vmem:[#allocation2] sm:$0xff]
        %v294 = vld [vmem:[#allocation2 + $0x8] sm:$0xff]
        %v295 = vld [vmem:[#allocation2 + $0x10] sm:$0xff]
        %v296 = vld [vmem:[#allocation2 + $0x18] sm:$0xff]
        %v297 = vld [vmem:[#allocation2 + $0x20] sm:$0xff]
        %v298 = vld [vmem:[#allocation2 + $0x28] sm:$0xff]
        %v299 = vld [vmem:[#allocation2 + $0x30] sm:$0xff]
        %v300 = vld [vmem:[#allocation2 + $0x38] sm:$0xff]
        %v301 = vadd.f32 %v293, %v226
        %v302 = vadd.f32 %v294, %v229
        %v303 = vadd.f32 %v295, %v232
        %v304 = vadd.f32 %v296, %v235
        %v305 = vadd.f32 %v297, %v238
        %v306 = vadd.f32 %v298, %v241
        %v307 = vadd.f32 %v299, %v244
        %v308 = vadd.f32 %v300, %v247
        %vm309 = vcmask 7168
        %310 = vst.msk [vmem:[#allocation2] sm:$0xff] %vm309, %v301
        %311 = vst.msk [vmem:[#allocation2 + $0x8] sm:$0xff] %vm309, %v302
        %312 = vst.msk [vmem:[#allocation2 + $0x10] sm:$0xff] %vm309, %v303
        %313 = vst.msk [vmem:[#allocation2 + $0x18] sm:$0xff] %vm309, %v304
        %314 = vst.msk [vmem:[#allocation2 + $0x20] sm:$0xff] %vm309, %v305
        %315 = vst.msk [vmem:[#allocation2 + $0x28] sm:$0xff] %vm309, %v306
        %316 = vst.msk [vmem:[#allocation2 + $0x30] sm:$0xff] %vm309, %v307
        %317 = vst.msk [vmem:[#allocation2 + $0x38] sm:$0xff] %vm309, %v308
        %v318 = vld [vmem:[#allocation3] sm:$0xff]
        %v319 = vld [vmem:[#allocation3 + $0x8] sm:$0xff]
        %v320 = vld [vmem:[#allocation3 + $0x10] sm:$0xff]
        %v321 = vld [vmem:[#allocation3 + $0x18] sm:$0xff]
        %v322 = vld [vmem:[#allocation3 + $0x20] sm:$0xff]
        %v323 = vld [vmem:[#allocation3 + $0x28] sm:$0xff]
        %v324 = vld [vmem:[#allocation3 + $0x30] sm:$0xff]
        %v325 = vld [vmem:[#allocation3 + $0x38] sm:$0xff]
        %v326 = vmax.f32 %v318, %v250
        %v327 = vmax.f32 %v319, %v253
        %v328 = vmax.f32 %v320, %v256
        %v329 = vmax.f32 %v321, %v259
        %v330 = vmax.f32 %v322, %v262
        %v331 = vmax.f32 %v323, %v265
        %v332 = vmax.f32 %v324, %v268
        %v333 = vmax.f32 %v325, %v271
        %334 = vst.msk [vmem:[#allocation3] sm:$0xff] %vm309, %v326
        %335 = vst.msk [vmem:[#allocation3 + $0x8] sm:$0xff] %vm309, %v327
        %336 = vst.msk [vmem:[#allocation3 + $0x10] sm:$0xff] %vm309, %v328
        %337 = vst.msk [vmem:[#allocation3 + $0x18] sm:$0xff] %vm309, %v329
        %338 = vst.msk [vmem:[#allocation3 + $0x20] sm:$0xff] %vm309, %v330
        %339 = vst.msk [vmem:[#allocation3 + $0x28] sm:$0xff] %vm309, %v331
        %340 = vst.msk [vmem:[#allocation3 + $0x30] sm:$0xff] %vm309, %v332
        %341 = vst.msk [vmem:[#allocation3 + $0x38] sm:$0xff] %vm309, %v333
        // Predicated region
        $region41: #{tpu_custom_call.1} parent=31 // pred_check
          %p342 = pneg %p272
        $region42: #{tpu_custom_call.1} parent=31 // pred_check_branch
          %344 = sbr.rel (%p342) target = $region44
        $region43: #{tpu_custom_call.1} parent=31 // pred_region
          %v345 = vld [vmem:[#allocation2] sm:$0xff]
          %v346 = vld [vmem:[#allocation2 + $0x8] sm:$0xff]
          %v347 = vld [vmem:[#allocation2 + $0x10] sm:$0xff]
          %v348 = vld [vmem:[#allocation2 + $0x18] sm:$0xff]
          %v349 = vld [vmem:[#allocation2 + $0x20] sm:$0xff]
          %v350 = vld [vmem:[#allocation2 + $0x28] sm:$0xff]
          %v351 = vld [vmem:[#allocation2 + $0x30] sm:$0xff]
          %v352 = vld [vmem:[#allocation2 + $0x38] sm:$0xff]
          %v353 = vmul.f32 %v345, 0.00390625
          %v354 = vmul.f32 %v346, 0.00390625
          %v355 = vmul.f32 %v347, 0.00390625
          %v356 = vmul.f32 %v348, 0.00390625
          %v357 = vmul.f32 %v349, 0.00390625
          %v358 = vmul.f32 %v350, 0.00390625
          %v359 = vmul.f32 %v351, 0.00390625
          %v360 = vmul.f32 %v352, 0.00390625
          %v361 = vld [vmem:[#allocation3] sm:$0xff]
          %v362 = vld [vmem:[#allocation3 + $0x8] sm:$0xff]
          %v363 = vld [vmem:[#allocation3 + $0x10] sm:$0xff]
          %v364 = vld [vmem:[#allocation3 + $0x18] sm:$0xff]
          %v365 = vld [vmem:[#allocation3 + $0x20] sm:$0xff]
          %v366 = vld [vmem:[#allocation3 + $0x28] sm:$0xff]
          %v367 = vld [vmem:[#allocation3 + $0x30] sm:$0xff]
          %v368 = vld [vmem:[#allocation3 + $0x38] sm:$0xff]
          %v369 = vlaneseq
          %v370 = vand.u32 %v369, 127
          %vm371 = vcmp.eq.s32.totalorder %v370, 0
          %373 = vset.pattern.permute.xlu0 0
          %374 = vperm.xlu0 %373, %v353
          %v375 = vpop.permute.xlu0 %374
          %378 = vset.pattern.permute.xlu0 0
          %379 = vperm.xlu0 %378, %v354
          %v380 = vpop.permute.xlu0 %379
          %383 = vset.pattern.permute.xlu0 0
          %384 = vperm.xlu0 %383, %v355
          %v385 = vpop.permute.xlu0 %384
          %388 = vset.pattern.permute.xlu0 0
          %389 = vperm.xlu0 %388, %v356
          %v390 = vpop.permute.xlu0 %389
          %393 = vset.pattern.permute.xlu0 0
          %394 = vperm.xlu0 %393, %v357
          %v395 = vpop.permute.xlu0 %394
          %398 = vset.pattern.permute.xlu0 0
          %399 = vperm.xlu0 %398, %v358
          %v400 = vpop.permute.xlu0 %399
          %403 = vset.pattern.permute.xlu0 0
          %404 = vperm.xlu0 %403, %v359
          %v405 = vpop.permute.xlu0 %404
          %408 = vset.pattern.permute.xlu0 0
          %409 = vperm.xlu0 %408, %v360
          %v410 = vpop.permute.xlu0 %409
          %413 = vset.pattern.permute.xlu0 0
          %414 = vperm.xlu0 %413, %v361
          %v415 = vpop.permute.xlu0 %414
          %418 = vset.pattern.permute.xlu0 0
          %419 = vperm.xlu0 %418, %v362
          %v420 = vpop.permute.xlu0 %419
          %423 = vset.pattern.permute.xlu0 0
          %424 = vperm.xlu0 %423, %v363
          %v425 = vpop.permute.xlu0 %424
          %428 = vset.pattern.permute.xlu0 0
          %429 = vperm.xlu0 %428, %v364
          %v430 = vpop.permute.xlu0 %429
          %433 = vset.pattern.permute.xlu0 0
          %434 = vperm.xlu0 %433, %v365
          %v435 = vpop.permute.xlu0 %434
          %438 = vset.pattern.permute.xlu0 0
          %439 = vperm.xlu0 %438, %v366
          %v440 = vpop.permute.xlu0 %439
          %443 = vset.pattern.permute.xlu0 0
          %444 = vperm.xlu0 %443, %v367
          %v445 = vpop.permute.xlu0 %444
          %448 = vset.pattern.permute.xlu0 0
          %449 = vperm.xlu0 %448, %v368
          %v450 = vpop.permute.xlu0 %449
          %v452 = vsel %vm371, %v375, %v415
          %v453 = vsel %vm371, %v380, %v420
          %v454 = vsel %vm371, %v385, %v425
          %v455 = vsel %vm371, %v390, %v430
          %v456 = vsel %vm371, %v395, %v435
          %v457 = vsel %vm371, %v400, %v440
          %v458 = vsel %vm371, %v405, %v445
          %v459 = vsel %vm371, %v410, %v450
          %v460 = vld [vmem:[%s1] sm:$0xf]
          %vm461 = vcmask 523264
          %v463 = vsel %vm461, %v460, 0
          %465 = vmatprep.subr.mxu0 0.0
          %466 = vmatpush1.msra.mxu0 %v452
          %467 = vmatprep.subr.mxu0 0.0
          %468 = vmatpush1.msra.mxu0 %v453
          %469 = vmatprep.subr.mxu0 0.0
          %470 = vmatpush1.msra.mxu0 %v454
          %471 = vmatprep.subr.mxu0 0.0
          %472 = vmatpush1.msra.mxu0 %v455
          %473 = vmatprep.subr.mxu0 0.0
          %474 = vmatpush1.msra.mxu0 %v456
          %475 = vmatprep.subr.mxu0 0.0
          %476 = vmatpush1.msra.mxu0 %v457
          %477 = vmatprep.subr.mxu0 0.0
          %478 = vmatpush1.msra.mxu0 %v458
          %479 = vmatprep.subr.mxu0 0.0
          %480 = vmatpush1.msra.mxu0 %v459
          %481 = vmatprep.subr.mxu0 0.0
          %482 = vmatpush1.msra.mxu0 0.0
          %483 = vmatprep.subr.mxu0 0.0
          %484 = vmatpush1.msra.mxu0 0.0
          %485 = vmatprep.subr.mxu0 0.0
          %486 = vmatpush1.msra.mxu0 0.0
          %487 = vmatprep.subr.mxu0 0.0
          %488 = vmatpush1.msra.mxu0 0.0
          %489 = vmatprep.subr.mxu0 0.0
          %490 = vmatpush1.msra.mxu0 0.0
          %491 = vmatprep.subr.mxu0 0.0
          %492 = vmatpush1.msra.mxu0 0.0
          %493 = vmatprep.subr.mxu0 0.0
          %494 = vmatpush1.msra.mxu0 0.0
          %495 = vmatprep.subr.mxu0 0.0
          %496 = vmatpush1.msra.mxu0 0.0
          %497 = vmatprep.subr.mxu0 0.0
          %498 = vmatpush1.msra.mxu0 0.0
          %499 = vmatprep.subr.mxu0 0.0
          %500 = vmatpush1.msra.mxu0 0.0
          %501 = vmatprep.subr.mxu0 0.0
          %502 = vmatpush1.msra.mxu0 0.0
          %503 = vmatprep.subr.mxu0 0.0
          %504 = vmatpush1.msra.mxu0 0.0
          %505 = vmatprep.subr.mxu0 0.0
          %506 = vmatpush1.msra.mxu0 0.0
          %507 = vmatprep.subr.mxu0 0.0
          %508 = vmatpush1.msra.mxu0 0.0
          %509 = vmatprep.subr.mxu0 0.0
          %510 = vmatpush1.msra.mxu0 0.0
          %511 = vmatprep.subr.mxu0 0.0
          %512 = vmatpush1.msra.mxu0 0.0
          %513 = vmatprep.subr.mxu0 0.0
          %514 = vmatpush1.msra.mxu0 0.0
          %515 = vmatprep.subr.mxu0 0.0
          %516 = vmatpush1.msra.mxu0 0.0
          %517 = vmatprep.subr.mxu0 0.0
          %518 = vmatpush1.msra.mxu0 0.0
          %519 = vmatprep.subr.mxu0 0.0
          %520 = vmatpush1.msra.mxu0 0.0
          %521 = vmatprep.subr.mxu0 0.0
          %522 = vmatpush1.msra.mxu0 0.0
          %523 = vmatprep.subr.mxu0 0.0
          %524 = vmatpush1.msra.mxu0 0.0
          %525 = vmatprep.subr.mxu0 0.0
          %526 = vmatpush1.msra.mxu0 0.0
          %527 = vmatprep.subr.mxu0 0.0
          %528 = vmatpush1.msra.mxu0 0.0
          %529 = vmatprep.mubr.f32.mxu0 0.0
          %530 = vmatmul.mubr.f32.gmra.mrb[0].mxu0 %v463
          %v531 = vpop.f32.mrb[0].mxu0
          %v532 = vadd.f32 0.0, %v531
          %v533 = vpop.f32.mrb[0].mxu0
          %534 = vdwg.mxu0
          %v535 = vmax.f32 %v532, 0.0
          %v536 = vld [vmem:[%s2] sm:$0xff]
          %v537 = vld [vmem:[%s2 + $0x8] sm:$0xff]
          %v538 = vld [vmem:[%s2 + $0x10] sm:$0xff]
          %v539 = vld [vmem:[%s2 + $0x18] sm:$0xff]
          %v540 = vld [vmem:[%s2 + $0x20] sm:$0xff]
          %v541 = vld [vmem:[%s2 + $0x28] sm:$0xff]
          %v542 = vld [vmem:[%s2 + $0x30] sm:$0xff]
          %v543 = vld [vmem:[%s2 + $0x38] sm:$0xff]
          %vm544 = vcmask 31744
          %v546 = vsel %vm544, %v536, 0
          %v549 = vsel %vm544, %v537, 0
          %v552 = vsel %vm544, %v538, 0
          %v555 = vsel %vm544, %v539, 0
          %v558 = vsel %vm544, %v540, 0
          %v561 = vsel %vm544, %v541, 0
          %v564 = vsel %vm544, %v542, 0
          %v567 = vsel %vm544, %v543, 0
          %vm569 = vcmask 1043456
          %v571 = vsel %vm569, %v535, 0
          %573 = vmatprep.subr.mxu0 0.0
          %574 = vmatpush1.msra.mxu0 %v571
          %575 = vmatprep.subr.mxu0 0.0
          %576 = vmatpush1.msra.mxu0 0.0
          %577 = vmatprep.subr.mxu0 0.0
          %578 = vmatpush1.msra.mxu0 0.0
          %579 = vmatprep.subr.mxu0 0.0
          %580 = vmatpush1.msra.mxu0 0.0
          %581 = vmatprep.subr.mxu0 0.0
          %582 = vmatpush1.msra.mxu0 0.0
          %583 = vmatprep.subr.mxu0 0.0
          %584 = vmatpush1.msra.mxu0 0.0
          %585 = vmatprep.subr.mxu0 0.0
          %586 = vmatpush1.msra.mxu0 0.0
          %587 = vmatprep.subr.mxu0 0.0
          %588 = vmatpush1.msra.mxu0 0.0
          %589 = vmatprep.subr.mxu0 0.0
          %590 = vmatpush1.msra.mxu0 0.0
          %591 = vmatprep.subr.mxu0 0.0
          %592 = vmatpush1.msra.mxu0 0.0
          %593 = vmatprep.subr.mxu0 0.0
          %594 = vmatpush1.msra.mxu0 0.0
          %595 = vmatprep.subr.mxu0 0.0
          %596 = vmatpush1.msra.mxu0 0.0
          %597 = vmatprep.subr.mxu0 0.0
          %598 = vmatpush1.msra.mxu0 0.0
          %599 = vmatprep.subr.mxu0 0.0
          %600 = vmatpush1.msra.mxu0 0.0
          %601 = vmatprep.subr.mxu0 0.0
          %602 = vmatpush1.msra.mxu0 0.0
          %603 = vmatprep.subr.mxu0 0.0
          %604 = vmatpush1.msra.mxu0 0.0
          %605 = vmatprep.subr.mxu0 0.0
          %606 = vmatpush1.msra.mxu0 0.0
          %607 = vmatprep.subr.mxu0 0.0
          %608 = vmatpush1.msra.mxu0 0.0
          %609 = vmatprep.subr.mxu0 0.0
          %610 = vmatpush1.msra.mxu0 0.0
          %611 = vmatprep.subr.mxu0 0.0
          %612 = vmatpush1.msra.mxu0 0.0
          %613 = vmatprep.subr.mxu0 0.0
          %614 = vmatpush1.msra.mxu0 0.0
          %615 = vmatprep.subr.mxu0 0.0
          %616 = vmatpush1.msra.mxu0 0.0
          %617 = vmatprep.subr.mxu0 0.0
          %618 = vmatpush1.msra.mxu0 0.0
          %619 = vmatprep.subr.mxu0 0.0
          %620 = vmatpush1.msra.mxu0 0.0
          %621 = vmatprep.subr.mxu0 0.0
          %622 = vmatpush1.msra.mxu0 0.0
          %623 = vmatprep.subr.mxu0 0.0
          %624 = vmatpush1.msra.mxu0 0.0
          %625 = vmatprep.subr.mxu0 0.0
          %626 = vmatpush1.msra.mxu0 0.0
          %627 = vmatprep.subr.mxu0 0.0
          %628 = vmatpush1.msra.mxu0 0.0
          %629 = vmatprep.subr.mxu0 0.0
          %630 = vmatpush1.msra.mxu0 0.0
          %631 = vmatprep.subr.mxu0 0.0
          %632 = vmatpush1.msra.mxu0 0.0
          %633 = vmatprep.subr.mxu0 0.0
          %634 = vmatpush1.msra.mxu0 0.0
          %635 = vmatprep.subr.mxu0 0.0
          %636 = vmatpush1.msra.mxu0 0.0
          %637 = vmatprep.mubr.f32.mxu0 0.0
          %638 = vmatmul.mubr.f32.gmra.mrb[0].mxu0 %v546
          %v639 = vpop.f32.mrb[0].mxu0
          %v640 = vadd.f32 0.0, %v639
          %v641 = vpop.f32.mrb[0].mxu0
          %642 = vmatprep.mubr.f32.mxu0 0.0
          %643 = vmatmul.mubr.f32.gmra.mrb[0].mxu0 %v549
          %v644 = vpop.f32.mrb[0].mxu0
          %v645 = vadd.f32 0.0, %v644
          %v646 = vpop.f32.mrb[0].mxu0
          %647 = vmatprep.mubr.f32.mxu0 0.0
          %648 = vmatmul.mubr.f32.gmra.mrb[0].mxu0 %v552
          %v649 = vpop.f32.mrb[0].mxu0
          %v650 = vadd.f32 0.0, %v649
          %v651 = vpop.f32.mrb[0].mxu0
          %652 = vmatprep.mubr.f32.mxu0 0.0
          %653 = vmatmul.mubr.f32.gmra.mrb[0].mxu0 %v555
          %v654 = vpop.f32.mrb[0].mxu0
          %v655 = vadd.f32 0.0, %v654
          %v656 = vpop.f32.mrb[0].mxu0
          %657 = vmatprep.mubr.f32.mxu0 0.0
          %658 = vmatmul.mubr.f32.gmra.mrb[0].mxu0 %v558
          %v659 = vpop.f32.mrb[0].mxu0
          %v660 = vadd.f32 0.0, %v659
          %v661 = vpop.f32.mrb[0].mxu0
          %662 = vmatprep.mubr.f32.mxu0 0.0
          %663 = vmatmul.mubr.f32.gmra.mrb[0].mxu0 %v561
          %v664 = vpop.f32.mrb[0].mxu0
          %v665 = vadd.f32 0.0, %v664
          %v666 = vpop.f32.mrb[0].mxu0
          %667 = vmatprep.mubr.f32.mxu0 0.0
          %668 = vmatmul.mubr.f32.gmra.mrb[0].mxu0 %v564
          %v669 = vpop.f32.mrb[0].mxu0
          %v670 = vadd.f32 0.0, %v669
          %v671 = vpop.f32.mrb[0].mxu0
          %672 = vmatprep.mubr.f32.mxu0 0.0
          %673 = vmatmul.mubr.f32.gmra.mrb[0].mxu0 %v567
          %v674 = vpop.f32.mrb[0].mxu0
          %v675 = vadd.f32 0.0, %v674
          %v676 = vpop.f32.mrb[0].mxu0
          %677 = vdwg.mxu0
          %686 = vrot.lane.b32.xlu0 %v640, 127
          %v687 = vpop.permute.xlu0 %686
          %688 = vrot.lane.b32.xlu0 %v645, 127
          %v689 = vpop.permute.xlu0 %688
          %690 = vrot.lane.b32.xlu0 %v650, 127
          %v691 = vpop.permute.xlu0 %690
          %692 = vrot.lane.b32.xlu0 %v655, 127
          %v693 = vpop.permute.xlu0 %692
          %694 = vrot.lane.b32.xlu0 %v660, 127
          %v695 = vpop.permute.xlu0 %694
          %696 = vrot.lane.b32.xlu0 %v665, 127
          %v697 = vpop.permute.xlu0 %696
          %698 = vrot.lane.b32.xlu0 %v670, 127
          %v699 = vpop.permute.xlu0 %698
          %700 = vrot.lane.b32.xlu0 %v675, 127
          %v701 = vpop.permute.xlu0 %700
          %v710 = vadd.f32 %v640, %v687
          %v711 = vadd.f32 %v645, %v689
          %v712 = vadd.f32 %v650, %v691
          %v713 = vadd.f32 %v655, %v693
          %v714 = vadd.f32 %v660, %v695
          %v715 = vadd.f32 %v665, %v697
          %v716 = vadd.f32 %v670, %v699
          %v717 = vadd.f32 %v675, %v701
          %v718 = vxor.u32 %v710, 2147483648
          %v719 = vxor.u32 %v711, 2147483648
          %v720 = vxor.u32 %v712, 2147483648
          %v721 = vxor.u32 %v713, 2147483648
          %v722 = vxor.u32 %v714, 2147483648
          %v723 = vxor.u32 %v715, 2147483648
          %v724 = vxor.u32 %v716, 2147483648
          %v725 = vxor.u32 %v717, 2147483648
          %v726 = vmul.f32 %v718, 1.442695
          %v727 = vpow.pop %v726
          %v728 = vmul.f32 %v719, 1.442695
          %v729 = vpow.pop %v728
          %v730 = vmul.f32 %v720, 1.442695
          %v731 = vpow.pop %v730
          %v732 = vmul.f32 %v721, 1.442695
          %v733 = vpow.pop %v732
          %v734 = vmul.f32 %v722, 1.442695
          %v735 = vpow.pop %v734
          %v736 = vmul.f32 %v723, 1.442695
          %v737 = vpow.pop %v736
          %v738 = vmul.f32 %v724, 1.442695
          %v739 = vpow.pop %v738
          %v740 = vmul.f32 %v725, 1.442695
          %v741 = vpow.pop %v740
          %v742 = vadd.f32 %v727, 1.0
          %v743 = vadd.f32 %v729, 1.0
          %v744 = vadd.f32 %v731, 1.0
          %v745 = vadd.f32 %v733, 1.0
          %v746 = vadd.f32 %v735, 1.0
          %v747 = vadd.f32 %v737, 1.0
          %v748 = vadd.f32 %v739, 1.0
          %v749 = vadd.f32 %v741, 1.0
          %v750 = vrcp.pop %v742
          %v751 = vmul.f32 1.0, %v750
          %v752 = vrcp.pop %v743
          %v753 = vmul.f32 1.0, %v752
          %v754 = vrcp.pop %v744
          %v755 = vmul.f32 1.0, %v754
          %v756 = vrcp.pop %v745
          %v757 = vmul.f32 1.0, %v756
          %v758 = vrcp.pop %v746
          %v759 = vmul.f32 1.0, %v758
          %v760 = vrcp.pop %v747
          %v761 = vmul.f32 1.0, %v760
          %v762 = vrcp.pop %v748
          %v763 = vmul.f32 1.0, %v762
          %v764 = vrcp.pop %v749
          %v765 = vmul.f32 1.0, %v764
          %766 = vst.msk [vmem:[%s207] sm:$0xff] %vm309, %v751
          %767 = vst.msk [vmem:[%s207 + $0x8] sm:$0xff] %vm309, %v753
          %768 = vst.msk [vmem:[%s207 + $0x10] sm:$0xff] %vm309, %v755
          %769 = vst.msk [vmem:[%s207 + $0x18] sm:$0xff] %vm309, %v757
          %770 = vst.msk [vmem:[%s207 + $0x20] sm:$0xff] %vm309, %v759
          %771 = vst.msk [vmem:[%s207 + $0x28] sm:$0xff] %vm309, %v761
          %772 = vst.msk [vmem:[%s207 + $0x30] sm:$0xff] %vm309, %v763
          %773 = vst.msk [vmem:[%s207 + $0x38] sm:$0xff] %vm309, %v765
        $region44: #{tpu_custom_call.1} parent=31 // pred_fallthru
          _
        %p774 = scmp.lt.s32.totalorder %s21, 1
        %s775 = scalar_select %p774, %s21, 1
        %s776 = smul.addr %s775, 8
        %s777 = smul.addr %s776, 8
        %s778 = scalar_lea.vmem %s3, %s777
        // Predicated region
        $region45: #{tpu_custom_call.1} parent=31 // pred_check
          %p779 = pneg %p117
        $region46: #{tpu_custom_call.1} parent=31 // pred_check_branch
          %781 = sbr.rel (%p779) target = $region48
        $region47: #{tpu_custom_call.1} parent=31 // pred_region
          _
        $region48: #{tpu_custom_call.1} parent=31 // pred_fallthru
          _
      $region32: #{tpu_custom_call.1} parent=5 // pred_fallthru
        _
      %p782 = scmp.le.s32.totalorder 2, %s12
      // Predicated region
      $region49: #{tpu_custom_call.1} parent=5 // pred_check
        %p783 = pneg %p782
      $region50: #{tpu_custom_call.1} parent=5 // pred_check_branch
        %785 = sbr.rel (%p783) target = $region52
      $region51: #{tpu_custom_call.1} parent=5 // pred_region
        %s786 = ssub.s32 %s12, 2
        // Predicated region
        $region53: #{tpu_custom_call.1} parent=51 // pred_check
          %p787 = pneg %p123
        $region54: #{tpu_custom_call.1} parent=51 // pred_check_branch
          %789 = sbr.rel (%p787) target = $region56
        $region55: #{tpu_custom_call.1} parent=51 // pred_region
          %p790 = scmp.lt.s32.totalorder %s23, 1
          %s791 = scalar_select %p790, %s23, 1
          %s792 = smul.addr %s791, 8
          %s793 = smul.addr %s792, 8
          %s794 = scalar_lea.vmem %s3, %s793
        $region56: #{tpu_custom_call.1} parent=51 // pred_fallthru
          _
      $region52: #{tpu_custom_call.1} parent=5 // pred_fallthru
        _
    $region6: #{tpu_custom_call.1} parent=1 // loop_footer
      %s16 = sadd.s32 1, %s12
    $region7: #{tpu_custom_call.1} parent=1 // loop_footer_branch
      %11 = sbr.rel target = $region3
    $region8: #{tpu_custom_call.1} parent=1 // loop_exit
      _
    %795 = vsyncpa [#allocation5], 1
    %s796 = scalar_lea.sflag [#allocation5], 1
    %797 = vsyncpa %s796, 1

</llo_original>
